<compile_context>
chip_gen: v5e
topology: v5e:2x2
jax: 0.10.0
libtpu: 0.0.40
codegen_flags: <defaults>
</compile_context>

<pallas_src>
import functools

import jax
import jax.numpy as jnp
from jax.experimental import pallas as pl
from jax.experimental.pallas import tpu as pltpu


# --------------------------------------------------------------------------- #
# Kernel (feature-major: features on sublanes, batch on lanes)
# --------------------------------------------------------------------------- #
def symoden_r_kernel(xu_ref, wf1_ref, wf2_ref, wbwd_ref, bias_ref, out_ref):
    n2 = out_ref.shape[0]              # 2n (state dim)
    n = n2 // 2
    h = wbwd_ref.shape[1]              # H_net hidden width

    xu = xu_ref[...]                   # (2n+2, TB): rows = [q ; p ; u ; 1]
    u_row = xu[n2:n2 + 1, :]           # (1, TB)  control input

    # ---- fused layer 1 (H_net + g_net), layer-1 biases folded via ones row --
    hf1 = jnp.tanh(jnp.dot(wf1_ref[...], xu,
                           preferred_element_type=jnp.float32))     # (h+gh, TB)
    h1 = hf1[0:h, :]                   # tanh(x @ W1 + b1)^T            (h, TB)

    # ---- fused layer 2: rows 0:h -> H_net z2 ; rows h:h+2n -> [0 ; g(q)] ----
    zf2 = jnp.dot(wf2_ref[...], hf1,
                  preferred_element_type=jnp.float32) + bias_ref[0:h + n2, :]
    h2 = jnp.tanh(zf2[0:h, :])                                       # (h, TB)
    F_pad = zf2[h:h + n2, :] * u_row   # [0 ; g(q)*u] already in output layout

    # ---- analytic grad of sum(H) w.r.t. (q, p)  (== torch.autograd.grad) ----
    w3t = bias_ref[h + n2:h + n2 + h, :]                              # (h, 1)
    dh2 = w3t * (1.0 - h2 * h2)                                       # (h, TB)
    dh1 = jnp.dot(wbwd_ref[0:h, :], dh2,                              # W2 @ .
                  preferred_element_type=jnp.float32)                 # (h, TB)
    dz1 = dh1 * (1.0 - h1 * h1)
    # Wbwd rows h:h+2n hold M @ W1 = [W1_p ; -W1_q], so this matmul produces
    # (dH @ M^T)^T directly.
    hvf = jnp.dot(wbwd_ref[h:h + n2, :], dz1,
                  preferred_element_type=jnp.float32)                 # (2n, TB)

    out_ref[...] = hvf + F_pad         # single lane-dense full-tile store


# --------------------------------------------------------------------------- #
# One-time parameter packing (hoisted out of the per-call hot path)
# --------------------------------------------------------------------------- #
def pack_params(p):
    f32 = jnp.float32
    W1, b1, W2, b2, w3 = p["W1"], p["b1"], p["W2"], p["b2"], p["w3"]
    gW1, gb1, gW2, gb2 = p["gW1"], p["gb1"], p["gW2"], p["gb2"]
    n2, h = W1.shape
    n = n2 // 2
    gh = gW1.shape[1]

    # fused layer-1 weight, acts on packed input [q ; p ; u ; 1]:
    #   rows 0:h    -> [ W1^T  | 0_u | b1^T  ]
    #   rows h:h+gh -> [ gW1^T | 0_p | 0_u | gb1^T ]
    wf1 = jnp.concatenate([
        jnp.concatenate([W1.T, jnp.zeros((h, 1), f32), b1.T], axis=1),
        jnp.concatenate([gW1.T, jnp.zeros((gh, n + 1), f32), gb1.T], axis=1),
    ], axis=0)                                            # (h+gh, 2n+2)

    # fused layer-2 weight (block diagonal; g-part padded to 2n rows so the
    # control term comes out already laid out as [0 ; g(q)]):
    wf2 = jnp.concatenate([
        jnp.concatenate([W2.T, jnp.zeros((h, gh), f32)], axis=1),
        jnp.zeros((n, h + gh), f32),
        jnp.concatenate([jnp.zeros((n, h), f32), gW2.T], axis=1),
    ], axis=0)                                            # (h+2n, h+gh)

    # backward weights: [ W2 ; M @ W1 ]  with  M = [[0, I], [-I, 0]]
    wbwd = jnp.concatenate([W2, W1[n:, :], -W1[:n, :]], axis=0)   # (h+2n, h)

    # packed column biases: [ b2^T ; 0_n ; gb2^T ; w3^T ]
    bias = jnp.concatenate([b2.T, jnp.zeros((n, 1), f32), gb2.T, w3.T],
                           axis=0)                        # (2h+2n, 1)

    return {"wf1": wf1, "wf2": wf2, "wbwd": wbwd, "bias": bias}


# --------------------------------------------------------------------------- #
# Forward wrapper (keeps the module's (bs, 2n) batch-major interface)
# --------------------------------------------------------------------------- #
@functools.partial(jax.jit, static_argnames=("tb",))
def symoden_r_forward(x, u, packed, *, tb=256):
    """Pallas-backed SymODEN_R.forward(t, x) with control input u (get_u)."""
    assert tb % 128 == 0, "batch tile must be a multiple of 128 lanes"
    bs, n2 = x.shape

    # feature-major packed input [q ; p ; u ; 1] -> (2n+2, bs); pad batch to tile.
    xu = jnp.concatenate([x.T, u.T, jnp.ones((1, bs), x.dtype)], axis=0)
    bs_pad = max(tb, pl.cdiv(bs, tb) * tb)
    if bs_pad != bs:
        xu = jnp.pad(xu, ((0, 0), (0, bs_pad - bs)))

    wf1, wf2, wbwd, bias = (packed["wf1"], packed["wf2"],
                            packed["wbwd"], packed["bias"])

    def resident(a):  # whole array, fetched once, VMEM-resident across the grid
        return pl.BlockSpec(a.shape, lambda i: (0, 0))

    out_t = pl.pallas_call(
        symoden_r_kernel,
        out_shape=jax.ShapeDtypeStruct((n2, bs_pad), jnp.float32),
        grid=(bs_pad // tb,),
        in_specs=[
            pl.BlockSpec((xu.shape[0], tb), lambda i: (0, i)),   # batch on lanes
            resident(wf1), resident(wf2), resident(wbwd), resident(bias),
        ],
        out_specs=pl.BlockSpec((n2, tb), lambda i: (0, i)),
        compiler_params=pltpu.CompilerParams(
            dimension_semantics=("parallel",)),
    )(xu, wf1, wf2, wbwd, bias)

    # TODO(synk): an ODE-integrator loop could keep the state feature-major and
    # skip these wrapper-side transposes entirely.
    return out_t[:, :bs].T


# --------------------------------------------------------------------------- #
# Reference (pure JAX, autodiff + explicit M) and parameter init
# --------------------------------------------------------------------------- #
def permutation_tensor(input_dim):
    # assume_canonical_coords=True branch of SymODEN_R.permutation_tensor
    M = jnp.eye(input_dim, dtype=jnp.float32)
    return jnp.concatenate([M[input_dim // 2:], -M[:input_dim // 2]], axis=0)


def init_params(key, input_dim, hidden, g_hidden):
    n = input_dim // 2
    ks = jax.random.split(key, 8)
    s = 0.3
    return {
        # H_net
        "W1":  s * jax.random.normal(ks[0], (input_dim, hidden), jnp.float32),
        "b1":  s * jax.random.normal(ks[1], (1, hidden), jnp.float32),
        "W2":  s * jax.random.normal(ks[2], (hidden, hidden), jnp.float32),
        "b2":  s * jax.random.normal(ks[3], (1, hidden), jnp.float32),
        "w3":  s * jax.random.normal(ks[4], (1, hidden), jnp.float32),  # last layer (stored transposed)
        "b3":  jnp.zeros((1, 1), jnp.float32),   # does not affect dH -> not needed in kernel
        # g_net
        "gW1": s * jax.random.normal(ks[5], (n, g_hidden), jnp.float32),
        "gb1": s * jax.random.normal(ks[6], (1, g_hidden), jnp.float32),
        "gW2": s * jax.random.normal(ks[7], (g_hidden, n), jnp.float32),
        "gb2": jnp.zeros((1, n), jnp.float32),
    }


def ref_forward(x, u, p):
    """Pure-JAX reference matching PyTorch semantics (autodiff + explicit M)."""
    hp = jax.lax.Precision.HIGHEST

    def H_sum(qp):
        h1 = jnp.tanh(jnp.dot(qp, p["W1"], precision=hp) + p["b1"][0])
        h2 = jnp.tanh(jnp.dot(h1, p["W2"], precision=hp) + p["b2"][0])
        H = jnp.dot(h2, p["w3"][0], precision=hp) + p["b3"][0, 0]
        return jnp.sum(H)

    M = permutation_tensor(x.shape[1])
    dH = jax.grad(H_sum)(x)
    Hvf = jnp.dot(dH, M.T, precision=hp)
    n = x.shape[1] // 2
    q = x[:, :n]
    gh1 = jnp.tanh(jnp.dot(q, p["gW1"], precision=hp) + p["gb1"][0])
    g_q = jnp.dot(gh1, p["gW2"], precision=hp) + p["gb2"][0]
    F = g_q * u
    Fvf = jnp.concatenate([jnp.zeros_like(F), F], axis=1)
    return Hvf + Fvf


if __name__ == "__main__":
    # n = 4 (input_dim = 8), hidden = 32; batch 512 tiled at 256 lanes/step so
    # the grid has even length 2 (keeps both v7x TensorCores busy; plain
    # 2-step loop on v5e/v6e).
    bs, input_dim, hidden, g_hidden, tb = 512, 8, 32, 32, 256

    key = jax.random.PRNGKey(0)
    kx, ku, kp = jax.random.split(key, 3)
    x = jax.random.normal(kx, (bs, input_dim), jnp.float32)   # (q, p) concatenated
    u = jax.random.normal(ku, (bs, 1), jnp.float32)           # control (via get_u)
    params = init_params(kp, input_dim, hidden, g_hidden)
    packed = pack_params(params)   # hoisted: once per model, not per forward call

    out = symoden_r_forward(x, u, packed, tb=tb)
    out = jax.block_until_ready(out)

    ref = ref_forward(x, u, params)
    assert out.shape == (bs, input_dim)
    # tolerance allows for MXU f32 rounding-path differences vs. the XLA
    # reference; structural/sign/packing bugs would show as O(0.1-1) errors.
    assert jnp.allclose(out, ref, atol=1e-3, rtol=1e-3), \
        "mismatch vs JAX autodiff reference"

    print("KERNEL_OK")
</pallas_src>

<mosaic_0001>
module attributes {stable_mosaic.version = 11 : i64} {
  func.func @symoden_r_kernel(%arg0: i32, %arg1: memref<10x256xf32, #tpu.memory_space<vmem>>, %arg2: memref<64x10xf32, #tpu.memory_space<vmem>>, %arg3: memref<40x64xf32, #tpu.memory_space<vmem>>, %arg4: memref<40x32xf32, #tpu.memory_space<vmem>>, %arg5: memref<72x1xf32, #tpu.memory_space<vmem>>, %arg6: memref<8x256xf32, #tpu.memory_space<vmem>>) attributes {dimension_semantics = [#tpu.dimension_semantics<parallel>], iteration_bounds = array<i64: 2>, scalar_prefetch = 0 : i64, scratch_operands = 0 : i64, tpu.core_type = #tpu.core_type<tc>, window_params = [{transform_indices = @transform_0, window_bounds = array<i64: 10, 256>}, {pipeline_mode = #tpu.pipeline_mode<synchronous>, transform_indices = @transform_1, window_bounds = array<i64: 64, 10>}, {pipeline_mode = #tpu.pipeline_mode<synchronous>, transform_indices = @transform_2, window_bounds = array<i64: 40, 64>}, {pipeline_mode = #tpu.pipeline_mode<synchronous>, transform_indices = @transform_3, window_bounds = array<i64: 40, 32>}, {pipeline_mode = #tpu.pipeline_mode<synchronous>, transform_indices = @transform_4, window_bounds = array<i64: 72, 1>}, {transform_indices = @transform_5, window_bounds = array<i64: 8, 256>}]} {
    %c0 = arith.constant 0 : index
    %c0_0 = arith.constant 0 : index
    %0 = vector.load %arg1[%c0, %c0_0] : memref<10x256xf32, #tpu.memory_space<vmem>>, vector<10x256xf32>
    %1 = vector.extract_strided_slice %0 {offsets = [8, 0], sizes = [1, 256], strides = [1, 1]} : vector<10x256xf32> to vector<1x256xf32>
    %c0_1 = arith.constant 0 : index
    %c0_2 = arith.constant 0 : index
    %2 = vector.load %arg2[%c0_1, %c0_2] : memref<64x10xf32, #tpu.memory_space<vmem>>, vector<64x10xf32>
    %cst = arith.constant dense<0.000000e+00> : vector<64x256xf32>
    %3 = tpu.matmul %2, %0, %cst {dimension_numbers = #tpu.dot_dimension_numbers<[1], [0], [0], [1], [0, 0, 1, 1], [], []>} : vector<64x10xf32>, vector<10x256xf32>, vector<64x256xf32> -> vector<64x256xf32>
    %4 = math.tanh %3 : vector<64x256xf32>
    %5 = vector.extract_strided_slice %4 {offsets = [0, 0], sizes = [32, 256], strides = [1, 1]} : vector<64x256xf32> to vector<32x256xf32>
    %c0_3 = arith.constant 0 : index
    %c0_4 = arith.constant 0 : index
    %6 = vector.load %arg3[%c0_3, %c0_4] : memref<40x64xf32, #tpu.memory_space<vmem>>, vector<40x64xf32>
    %cst_5 = arith.constant dense<0.000000e+00> : vector<40x256xf32>
    %7 = tpu.matmul %6, %4, %cst_5 {dimension_numbers = #tpu.dot_dimension_numbers<[1], [0], [0], [1], [0, 0, 1, 1], [], []>} : vector<40x64xf32>, vector<64x256xf32>, vector<40x256xf32> -> vector<40x256xf32>
    %c0_6 = arith.constant 0 : index
    %c0_7 = arith.constant 0 : index
    %8 = vector.load %arg5[%c0_6, %c0_7] : memref<72x1xf32, #tpu.memory_space<vmem>>, vector<40x1xf32>
    %9 = vector.broadcast %8 : vector<40x1xf32> to vector<40x256xf32>
    %10 = arith.addf %7, %9 : vector<40x256xf32>
    %11 = vector.extract_strided_slice %10 {offsets = [0, 0], sizes = [32, 256], strides = [1, 1]} : vector<40x256xf32> to vector<32x256xf32>
    %12 = math.tanh %11 : vector<32x256xf32>
    %13 = vector.extract_strided_slice %10 {offsets = [32, 0], sizes = [8, 256], strides = [1, 1]} : vector<40x256xf32> to vector<8x256xf32>
    %14 = vector.broadcast %1 : vector<1x256xf32> to vector<8x256xf32>
    %15 = arith.mulf %13, %14 : vector<8x256xf32>
    %c40 = arith.constant 40 : index
    %c0_8 = arith.constant 0 : index
    %16 = vector.load %arg5[%c40, %c0_8] : memref<72x1xf32, #tpu.memory_space<vmem>>, vector<32x1xf32>
    %17 = arith.mulf %12, %12 : vector<32x256xf32>
    %cst_9 = arith.constant 1.000000e+00 : f32
    %18 = vector.broadcast %cst_9 : f32 to vector<32x256xf32>
    %19 = arith.subf %18, %17 : vector<32x256xf32>
    %20 = vector.broadcast %16 : vector<32x1xf32> to vector<32x256xf32>
    %21 = arith.mulf %20, %19 : vector<32x256xf32>
    %c0_10 = arith.constant 0 : index
    %c0_11 = arith.constant 0 : index
    %22 = vector.load %arg4[%c0_10, %c0_11] : memref<40x32xf32, #tpu.memory_space<vmem>>, vector<32x32xf32>
    %cst_12 = arith.constant dense<0.000000e+00> : vector<32x256xf32>
    %23 = tpu.matmul %22, %21, %cst_12 {dimension_numbers = #tpu.dot_dimension_numbers<[1], [0], [0], [1], [0, 0, 1, 1], [], []>} : vector<32x32xf32>, vector<32x256xf32>, vector<32x256xf32> -> vector<32x256xf32>
    %24 = arith.mulf %5, %5 : vector<32x256xf32>
    %cst_13 = arith.constant 1.000000e+00 : f32
    %25 = vector.broadcast %cst_13 : f32 to vector<32x256xf32>
    %26 = arith.subf %25, %24 : vector<32x256xf32>
    %27 = arith.mulf %23, %26 : vector<32x256xf32>
    %c32 = arith.constant 32 : index
    %c0_14 = arith.constant 0 : index
    %28 = vector.load %arg4[%c32, %c0_14] : memref<40x32xf32, #tpu.memory_space<vmem>>, vector<8x32xf32>
    %cst_15 = arith.constant dense<0.000000e+00> : vector<8x256xf32>
    %29 = tpu.matmul %28, %27, %cst_15 {dimension_numbers = #tpu.dot_dimension_numbers<[1], [0], [0], [1], [0, 0, 1, 1], [], []>} : vector<8x32xf32>, vector<32x256xf32>, vector<8x256xf32> -> vector<8x256xf32>
    %30 = arith.addf %29, %15 : vector<8x256xf32>
    %c0_16 = arith.constant 0 : index
    %c0_17 = arith.constant 0 : index
    %31 = vector.load %arg6[%c0_16, %c0_17] : memref<8x256xf32, #tpu.memory_space<vmem>>, vector<8x256xf32>
    tpu.vector_store %arg6[%c0_16, %c0_17], %30 {strides = array<i32>} : memref<8x256xf32, #tpu.memory_space<vmem>>, vector<8x256xf32>,
    return
  }
  func.func @transform_0(%arg0: i32) -> (i32, i32) {
    %c0_i32 = arith.constant 0 : i32
    %c0_i32_0 = arith.constant 0 : i32
    return %c0_i32, %arg0 : i32, i32
  }
  func.func @transform_1(%arg0: i32) -> (i32, i32) {
    %c0_i32 = arith.constant 0 : i32
    %c0_i32_0 = arith.constant 0 : i32
    %c0_i32_1 = arith.constant 0 : i32
    return %c0_i32, %c0_i32_0 : i32, i32
  }
  func.func @transform_2(%arg0: i32) -> (i32, i32) {
    %c0_i32 = arith.constant 0 : i32
    %c0_i32_0 = arith.constant 0 : i32
    %c0_i32_1 = arith.constant 0 : i32
    return %c0_i32, %c0_i32_0 : i32, i32
  }
  func.func @transform_3(%arg0: i32) -> (i32, i32) {
    %c0_i32 = arith.constant 0 : i32
    %c0_i32_0 = arith.constant 0 : i32
    %c0_i32_1 = arith.constant 0 : i32
    return %c0_i32, %c0_i32_0 : i32, i32
  }
  func.func @transform_4(%arg0: i32) -> (i32, i32) {
    %c0_i32 = arith.constant 0 : i32
    %c0_i32_0 = arith.constant 0 : i32
    %c0_i32_1 = arith.constant 0 : i32
    return %c0_i32, %c0_i32_0 : i32, i32
  }
  func.func @transform_5(%arg0: i32) -> (i32, i32) {
    %c0_i32 = arith.constant 0 : i32
    %c0_i32_0 = arith.constant 0 : i32
    return %c0_i32, %arg0 : i32, i32
  }
}

</mosaic_0001>

<llo_original>
// kernel: symoden_r_forward.1
$region0: #{symoden_r_forward.1}
  #allocation0 [shape = 'u32[]', space=smem, size = 0x4, offset = 0x4, fixed_abs, tag = 'smem constant byte address 0x4 - core index']
  #allocation1 [shape = 'u32[72,128]{1,0:T(1,128)}', space=vmem, size = 0x9000, scoped, tag = 'internal scratch']
  %s0 = inlined_call_operand.vmem [shape: f32[10,512], index: 0, kind: input, shape index: {}]
  %s1 = inlined_call_operand.vmem [shape: f32[64,10], index: 1, kind: input, shape index: {}]
  %s2 = inlined_call_operand.vmem [shape: f32[40,64], index: 2, kind: input, shape index: {}]
  %s3 = inlined_call_operand.vmem [shape: f32[40,32], index: 3, kind: input, shape index: {}]
  %s4 = inlined_call_operand.vmem [shape: f32[72,1], index: 4, kind: input, shape index: {}]
  %s5 = inlined_call_operand.hbm [shape: f32[8,512], index: 5, kind: output, shape index: {}]
  %s6 = sld [smem:[#allocation0]]
  $region76: #{symoden_r_forward.1} parent=0
    _
  %s8 = ssub.s32 1, %s6
  %s9 = scalar_select 0, %s8, %s6
  $region1: #{symoden_r_forward.1} parent=0
    #allocation2 [shape = 'u8[32768]{0}', space=vmem, size = 0x8000, scoped, tag = 'input window, operand 0']
    #allocation3 [shape = 'u8[16384]{0}', space=vmem, size = 0x4000, scoped, tag = 'output window, operand 0']
    #allocation4 [shape = 's32[2]{0}', space=sflag, size = 0x8, scoped, tag = 'scoped memory for symoden_r_forward.1']
    %10 = vsyncpa [#allocation4], 0
    %s11 = scalar_lea.sflag [#allocation4], 1
    %12 = vsyncpa %s11, 0
    loop: start=0, step=1, limit=4
    $region2: #{symoden_r_forward.1} parent=1 // loop_pre_header
      _
    $region3: #{symoden_r_forward.1} parent=1 // loop_header
      %s14 = sphi 0, %s18
      %p15 = scmp.ge.s32.totalorder %s14, 4
      %s24 = sphi 0, %s26
      %s27 = sphi 0, %s24
      %s28 = sphi 0, %s27
      %s44 = sphi 0, %s28
      %s48 = sphi 0, %s48
      %s50 = sphi 0, %s48
      %s51 = sphi 0, %s50
      %s65 = sphi 0, %s51
      %s69 = sphi 0, %s69
      %s71 = sphi 0, %s69
      %s72 = sphi 0, %s71
      %s86 = sphi 0, %s72
      %s90 = sphi 0, %s90
      %s92 = sphi 0, %s90
      %s93 = sphi 0, %s92
      %s107 = sphi 0, %s93
      %s111 = sphi 0, %s111
      %s113 = sphi 0, %s111
      %s114 = sphi 0, %s113
      %s128 = sphi 0, %s114
      %s134 = sphi 0, %s136
      %s137 = sphi 0, %s134
      %s138 = sphi 0, %s137
      %s154 = sphi 0, %s138
    $region4: #{symoden_r_forward.1} parent=1 // loop_header_branch
      %17 = sbr.rel (%p15) target = $region8
    $region5: #{symoden_r_forward.1} parent=1 // loop_body
      %s19 = ssub.s32 %s14, 1
      %s20 = ssub.s32 %s14, 2
      %s21 = sadd.s32 %s14, 1
      %s22 = ssub.s32 %s14, %s21
      %p23 = scmp.eq.s32.totalorder %s22, 0
      %s25 = sadd.s32 %s24, 1
      %s26 = scalar_select %p23, %s24, %s25
      %p29 = pneg %p23
      %p30 = scmp.eq.s32.totalorder %s14, 1
      %p31 = por %p29, %p30
      %p32 = scmp.ne.s32.totalorder %s24, %s27
      %p33 = scmp.eq.s32.totalorder %s14, 0
      %p34 = por %p32, %p33
      %p35 = scmp.ne.s32.totalorder %s24, %s27
      %p36 = scmp.eq.s32.totalorder %s19, 1
      %p37 = por %p35, %p36
      %p38 = scmp.ne.s32.totalorder %s27, %s28
      %p39 = scmp.eq.s32.totalorder %s19, 0
      %p40 = por %p38, %p39
      %p41 = scmp.ne.s32.totalorder %s27, %s28
      %p42 = scmp.eq.s32.totalorder %s20, 1
      %p43 = por %p41, %p42
      %p45 = scmp.ne.s32.totalorder %s28, %s44
      %p46 = scmp.eq.s32.totalorder %s20, 0
      %p47 = por %p45, %p46
      %s49 = sadd.s32 %s48, 1
      %p52 = scmp.eq.s32.totalorder %s14, 1
      %p53 = scmp.ne.s32.totalorder %s48, %s50
      %p54 = scmp.eq.s32.totalorder %s14, 0
      %p55 = por %p53, %p54
      %p56 = scmp.ne.s32.totalorder %s48, %s50
      %p57 = scmp.eq.s32.totalorder %s19, 1
      %p58 = por %p56, %p57
      %p59 = scmp.ne.s32.totalorder %s50, %s51
      %p60 = scmp.eq.s32.totalorder %s19, 0
      %p61 = por %p59, %p60
      %p62 = scmp.ne.s32.totalorder %s50, %s51
      %p63 = scmp.eq.s32.totalorder %s20, 1
      %p64 = por %p62, %p63
      %p66 = scmp.ne.s32.totalorder %s51, %s65
      %p67 = scmp.eq.s32.totalorder %s20, 0
      %p68 = por %p66, %p67
      %s70 = sadd.s32 %s69, 1
      %p73 = scmp.eq.s32.totalorder %s14, 1
      %p74 = scmp.ne.s32.totalorder %s69, %s71
      %p75 = scmp.eq.s32.totalorder %s14, 0
      %p76 = por %p74, %p75
      %p77 = scmp.ne.s32.totalorder %s69, %s71
      %p78 = scmp.eq.s32.totalorder %s19, 1
      %p79 = por %p77, %p78
      %p80 = scmp.ne.s32.totalorder %s71, %s72
      %p81 = scmp.eq.s32.totalorder %s19, 0
      %p82 = por %p80, %p81
      %p83 = scmp.ne.s32.totalorder %s71, %s72
      %p84 = scmp.eq.s32.totalorder %s20, 1
      %p85 = por %p83, %p84
      %p87 = scmp.ne.s32.totalorder %s72, %s86
      %p88 = scmp.eq.s32.totalorder %s20, 0
      %p89 = por %p87, %p88
      %s91 = sadd.s32 %s90, 1
      %p94 = scmp.eq.s32.totalorder %s14, 1
      %p95 = scmp.ne.s32.totalorder %s90, %s92
      %p96 = scmp.eq.s32.totalorder %s14, 0
      %p97 = por %p95, %p96
      %p98 = scmp.ne.s32.totalorder %s90, %s92
      %p99 = scmp.eq.s32.totalorder %s19, 1
      %p100 = por %p98, %p99
      %p101 = scmp.ne.s32.totalorder %s92, %s93
      %p102 = scmp.eq.s32.totalorder %s19, 0
      %p103 = por %p101, %p102
      %p104 = scmp.ne.s32.totalorder %s92, %s93
      %p105 = scmp.eq.s32.totalorder %s20, 1
      %p106 = por %p104, %p105
      %p108 = scmp.ne.s32.totalorder %s93, %s107
      %p109 = scmp.eq.s32.totalorder %s20, 0
      %p110 = por %p108, %p109
      %s112 = sadd.s32 %s111, 1
      %p115 = scmp.eq.s32.totalorder %s14, 1
      %p116 = scmp.ne.s32.totalorder %s111, %s113
      %p117 = scmp.eq.s32.totalorder %s14, 0
      %p118 = por %p116, %p117
      %p119 = scmp.ne.s32.totalorder %s111, %s113
      %p120 = scmp.eq.s32.totalorder %s19, 1
      %p121 = por %p119, %p120
      %p122 = scmp.ne.s32.totalorder %s113, %s114
      %p123 = scmp.eq.s32.totalorder %s19, 0
      %p124 = por %p122, %p123
      %p125 = scmp.ne.s32.totalorder %s113, %s114
      %p126 = scmp.eq.s32.totalorder %s20, 1
      %p127 = por %p125, %p126
      %p129 = scmp.ne.s32.totalorder %s114, %s128
      %p130 = scmp.eq.s32.totalorder %s20, 0
      %p131 = por %p129, %p130
      %s132 = ssub.s32 %s14, %s21
      %p133 = scmp.eq.s32.totalorder %s132, 0
      %s135 = sadd.s32 %s134, 1
      %s136 = scalar_select %p133, %s134, %s135
      %p139 = pneg %p133
      %p140 = scmp.eq.s32.totalorder %s14, 1
      %p141 = por %p139, %p140
      %p142 = scmp.ne.s32.totalorder %s134, %s137
      %p143 = scmp.eq.s32.totalorder %s14, 0
      %p144 = por %p142, %p143
      %p145 = scmp.ne.s32.totalorder %s134, %s137
      %p146 = scmp.eq.s32.totalorder %s19, 1
      %p147 = por %p145, %p146
      %p148 = scmp.ne.s32.totalorder %s137, %s138
      %p149 = scmp.eq.s32.totalorder %s19, 0
      %p150 = por %p148, %p149
      %p151 = scmp.ne.s32.totalorder %s137, %s138
      %p152 = scmp.eq.s32.totalorder %s20, 1
      %p153 = por %p151, %p152
      %p155 = scmp.ne.s32.totalorder %s138, %s154
      %p156 = scmp.eq.s32.totalorder %s20, 0
      %p157 = por %p155, %p156
      %p158 = scmp.le.s32.totalorder 1, %s14
      %p159 = scmp.lt.s32.totalorder %s14, 3
      %p160 = pnand %p158, %p159
      %p161 = pneg %p160
      // Predicated region
      $region9: #{symoden_r_forward.1} parent=5 // pred_check
        _
      $region10: #{symoden_r_forward.1} parent=5 // pred_check_branch
        %163 = sbr.rel (%p160) target = $region12
      $region11: #{symoden_r_forward.1} parent=5 // pred_region
        %s164 = ssub.s32 %s14, 1
        // Predicated region
        $region13: #{symoden_r_forward.1} parent=11 // pred_check
          %p165 = pneg %p61
        $region14: #{symoden_r_forward.1} parent=11 // pred_check_branch
          %167 = sbr.rel (%p165) target = $region16
        $region15: #{symoden_r_forward.1} parent=11 // pred_region
          _
        $region16: #{symoden_r_forward.1} parent=11 // pred_fallthru
          _
        // Predicated region
        $region17: #{symoden_r_forward.1} parent=11 // pred_check
          %p168 = pneg %p82
        $region18: #{symoden_r_forward.1} parent=11 // pred_check_branch
          %170 = sbr.rel (%p168) target = $region20
        $region19: #{symoden_r_forward.1} parent=11 // pred_region
          _
        $region20: #{symoden_r_forward.1} parent=11 // pred_fallthru
          _
        // Predicated region
        $region21: #{symoden_r_forward.1} parent=11 // pred_check
          %p171 = pneg %p103
        $region22: #{symoden_r_forward.1} parent=11 // pred_check_branch
          %173 = sbr.rel (%p171) target = $region24
        $region23: #{symoden_r_forward.1} parent=11 // pred_region
          _
        $region24: #{symoden_r_forward.1} parent=11 // pred_fallthru
          _
        // Predicated region
        $region25: #{symoden_r_forward.1} parent=11 // pred_check
          %p174 = pneg %p124
        $region26: #{symoden_r_forward.1} parent=11 // pred_check_branch
          %176 = sbr.rel (%p174) target = $region28
        $region27: #{symoden_r_forward.1} parent=11 // pred_region
          _
        $region28: #{symoden_r_forward.1} parent=11 // pred_fallthru
          _
      $region12: #{symoden_r_forward.1} parent=5 // pred_fallthru
        _
      %p177 = scmp.lt.s32.totalorder %s14, 2
      // Predicated region
      $region29: #{symoden_r_forward.1} parent=5 // pred_check
        %p178 = pneg %p177
      $region30: #{symoden_r_forward.1} parent=5 // pred_check_branch
        %180 = sbr.rel (%p178) target = $region32
      $region31: #{symoden_r_forward.1} parent=5 // pred_region
        // Predicated region
        $region33: #{symoden_r_forward.1} parent=31 // pred_check
          %p181 = pneg %p34
        $region34: #{symoden_r_forward.1} parent=31 // pred_check_branch
          %183 = sbr.rel (%p181) target = $region36
        $region35: #{symoden_r_forward.1} parent=31 // pred_region
          %s184 = sand.u32 %s24, 1
          %s185 = sand.u32 %s24, 1
          %s186 = smul.addr %s185, 32
          %s187 = scalar_lea.vmem [#allocation2], %s186
          %s188 = smul.u32 2, %s14
          %s189 = smul.addr %s188, 8
          %s190 = scalar_lea.vmem %s0, %s189
          // Predicated region
          $region37: #{symoden_r_forward.1} parent=35 // pred_check
            _
          $region38: #{symoden_r_forward.1} parent=35 // pred_check_branch
            %192 = sbr.rel (0) target = $region40
          $region39: #{symoden_r_forward.1} parent=35 // pred_region
            // Predicated region
            $region41: #{symoden_r_forward.1} parent=39 // pred_check
              _
            $region42: #{symoden_r_forward.1} parent=39 // pred_check_branch
              %194 = sbr.rel (0) target = $region44
            $region43: #{symoden_r_forward.1} parent=39 // pred_region
              loop: start=0, step=1, limit=1
              $region45: #{symoden_r_forward.1} parent=43 // loop_pre_header
                _
              $region46: #{symoden_r_forward.1} parent=43 // loop_header
                %s196 = sphi 0, %s200
                %p197 = scmp.ge.s32.totalorder %s196, 1
                %s201 = sphi %s190, %s190
                %s202 = sphi %s187, %s187
              $region47: #{symoden_r_forward.1} parent=43 // loop_header_branch
                %199 = sbr.rel (%p197) target = $region51
              $region48: #{symoden_r_forward.1} parent=43 // loop_body
                %v203 = vld [vmem:[%s201] sm:$0xff]
                %204 = vst [vmem:[%s202] sm:$0xff] %v203
                %v205 = vld [vmem:[%s201 + $0x8] sm:$0xff]
                %206 = vst [vmem:[%s202 + $0x8] sm:$0xff] %v205
                %v207 = vld [vmem:[%s201 + $0x20] sm:$0xff]
                %208 = vst [vmem:[%s202 + $0x10] sm:$0xff] %v207
                %v209 = vld [vmem:[%s201 + $0x28] sm:$0xff]
                %210 = vst [vmem:[%s202 + $0x18] sm:$0xff] %v209
              $region49: #{symoden_r_forward.1} parent=43 // loop_footer
                %s200 = sadd.s32 1, %s196
              $region50: #{symoden_r_forward.1} parent=43 // loop_footer_branch
                %195 = sbr.rel target = $region46
              $region51: #{symoden_r_forward.1} parent=43 // loop_exit
                _
            $region44: #{symoden_r_forward.1} parent=39 // pred_fallthru
              _
            // Predicated region
            $region52: #{symoden_r_forward.1} parent=39 // pred_check
              _
            $region53: #{symoden_r_forward.1} parent=39 // pred_check_branch
              %212 = sbr.rel target = $region55
            $region54: #{symoden_r_forward.1} parent=39 // pred_region
              _
            $region55: #{symoden_r_forward.1} parent=39 // pred_fallthru
              _
          $region40: #{symoden_r_forward.1} parent=35 // pred_fallthru
            _
          %213 = vnop
        $region36: #{symoden_r_forward.1} parent=31 // pred_fallthru
          _
      $region32: #{symoden_r_forward.1} parent=5 // pred_fallthru
        _
      %p214 = scmp.le.s32.totalorder 1, %s14
      %p215 = scmp.lt.s32.totalorder %s14, 3
      %p216 = pnand %p214, %p215
      %p217 = pneg %p216
      // Predicated region
      $region56: #{symoden_r_forward.1} parent=5 // pred_check
        _
      $region57: #{symoden_r_forward.1} parent=5 // pred_check_branch
        %219 = sbr.rel (%p216) target = $region59
      $region58: #{symoden_r_forward.1} parent=5 // pred_region
        %s220 = ssub.s32 %s14, 1
        %s221 = sand.u32 %s27, 1
        %s222 = sand.u32 %s27, 1
        %s223 = smul.addr %s222, 32
        %s224 = scalar_lea.vmem [#allocation2], %s223
        // Predicated region
        $region60: #{symoden_r_forward.1} parent=58 // pred_check
          %p225 = pneg %p40
        $region61: #{symoden_r_forward.1} parent=58 // pred_check_branch
          %227 = sbr.rel (%p225) target = $region63
        $region62: #{symoden_r_forward.1} parent=58 // pred_region
          _
        $region63: #{symoden_r_forward.1} parent=58 // pred_fallthru
          _
        %s228 = sand.u32 %s27, 1
        %s229 = sand.u32 %s27, 1
        %s230 = smul.addr %s229, 32
        %s231 = scalar_lea.vmem [#allocation2], %s230
        %p232 = pneg %p40
        %p233 = pneg %p37
        %p234 = pneg %p61
        %p235 = pneg %p58
        %p236 = pneg %p82
        %p237 = pneg %p79
        %p238 = pneg %p103
        %p239 = pneg %p100
        %p240 = pneg %p124
        %p241 = pneg %p121
        %p242 = pneg %p150
        %p243 = pneg %p147
        %s244 = sand.u32 %s137, 1
        %s245 = scalar_lea.sflag [#allocation4], %s244
        %s246 = sand.u32 %s137, 1
        %s247 = smul.addr %s246, 16
        %s248 = scalar_lea.vmem [#allocation3], %s247
        %s249 = smul.u32 2, %s19
        %s250 = smul.u32 2, %s19
        %v251 = vld [vmem:[%s224] sm:$0xff]
        %v252 = vld [vmem:[%s224 + $0x8] sm:$0xff]
        %v253 = vld [vmem:[%s224 + $0x10] sm:$0x3]
        %v254 = vld [vmem:[%s224 + $0x18] sm:$0x3]
        %v255 = vld [vmem:[%s1] sm:$0xff]
        %v256 = vld [vmem:[%s1 + $0x8] sm:$0xff]
        %v257 = vld [vmem:[%s1 + $0x10] sm:$0xff]
        %v258 = vld [vmem:[%s1 + $0x18] sm:$0xff]
        %v259 = vld [vmem:[%s1 + $0x20] sm:$0xff]
        %v260 = vld [vmem:[%s1 + $0x28] sm:$0xff]
        %v261 = vld [vmem:[%s1 + $0x30] sm:$0xff]
        %v262 = vld [vmem:[%s1 + $0x38] sm:$0xff]
        %vm263 = vcmask 80896
        %v265 = vsel %vm263, %v255, 0
        %v268 = vsel %vm263, %v256, 0
        %v271 = vsel %vm263, %v257, 0
        %v274 = vsel %vm263, %v258, 0
        %v277 = vsel %vm263, %v259, 0
        %v280 = vsel %vm263, %v260, 0
        %v283 = vsel %vm263, %v261, 0
        %v286 = vsel %vm263, %v262, 0
        %vm288 = vcmask 1041408
        %v290 = vsel %vm288, %v253, 0
        %v293 = vsel %vm288, %v254, 0
        %295 = vmatpush.msra.mxu0 0.0
        %296 = vmatpush.msra.mxu0 0.0
        %297 = vmatpush.msra.mxu0 0.0
        %298 = vmatpush.msra.mxu0 0.0
        %299 = vmatpush.msra.mxu0 0.0
        %300 = vmatpush.msra.mxu0 0.0
        %301 = vmatpush.msra.mxu0 0.0
        %302 = vmatpush.msra.mxu0 0.0
        %303 = vmatpush.msra.mxu0 0.0
        %304 = vmatpush.msra.mxu0 0.0
        %305 = vmatpush.msra.mxu0 0.0
        %306 = vmatpush.msra.mxu0 0.0
        %307 = vmatpush.msra.mxu0 0.0
        %308 = vmatpush.msra.mxu0 0.0
        %309 = vmatpush.msra.mxu0 %v290
        %310 = vmatpush.msra.mxu0 %v251
        %311 = vmatmul.f32.gmra.mxu0 %v265
        %v312 = vpop.f32.mrf.mxu0
        %v313 = vadd.f32 0.0, %v312
        %314 = vmatmul.f32.gmra.mxu0 %v268
        %v315 = vpop.f32.mrf.mxu0
        %v316 = vadd.f32 0.0, %v315
        %317 = vmatmul.f32.gmra.mxu0 %v271
        %v318 = vpop.f32.mrf.mxu0
        %v319 = vadd.f32 0.0, %v318
        %320 = vmatmul.f32.gmra.mxu0 %v274
        %v321 = vpop.f32.mrf.mxu0
        %v322 = vadd.f32 0.0, %v321
        %323 = vmatmul.f32.gmra.mxu0 %v277
        %v324 = vpop.f32.mrf.mxu0
        %v325 = vadd.f32 0.0, %v324
        %326 = vmatmul.f32.gmra.mxu0 %v280
        %v327 = vpop.f32.mrf.mxu0
        %v328 = vadd.f32 0.0, %v327
        %329 = vmatmul.f32.gmra.mxu0 %v283
        %v330 = vpop.f32.mrf.mxu0
        %v331 = vadd.f32 0.0, %v330
        %332 = vmatmul.f32.gmra.mxu0 %v286
        %v333 = vpop.f32.mrf.mxu0
        %v334 = vadd.f32 0.0, %v333
        %335 = vdwg.mxu0
        %336 = vmatpush.msra.mxu0 0.0
        %337 = vmatpush.msra.mxu0 0.0
        %338 = vmatpush.msra.mxu0 0.0
        %339 = vmatpush.msra.mxu0 0.0
        %340 = vmatpush.msra.mxu0 0.0
        %341 = vmatpush.msra.mxu0 0.0
        %342 = vmatpush.msra.mxu0 0.0
        %343 = vmatpush.msra.mxu0 0.0
        %344 = vmatpush.msra.mxu0 0.0
        %345 = vmatpush.msra.mxu0 0.0
        %346 = vmatpush.msra.mxu0 0.0
        %347 = vmatpush.msra.mxu0 0.0
        %348 = vmatpush.msra.mxu0 0.0
        %349 = vmatpush.msra.mxu0 0.0
        %350 = vmatpush.msra.mxu0 %v293
        %351 = vmatpush.msra.mxu0 %v252
        %352 = vmatmul.f32.gmra.mxu0 %v265
        %v353 = vpop.f32.mrf.mxu0
        %v354 = vadd.f32 0.0, %v353
        %355 = vmatmul.f32.gmra.mxu0 %v268
        %v356 = vpop.f32.mrf.mxu0
        %v357 = vadd.f32 0.0, %v356
        %358 = vmatmul.f32.gmra.mxu0 %v271
        %v359 = vpop.f32.mrf.mxu0
        %v360 = vadd.f32 0.0, %v359
        %361 = vmatmul.f32.gmra.mxu0 %v274
        %v362 = vpop.f32.mrf.mxu0
        %v363 = vadd.f32 0.0, %v362
        %364 = vmatmul.f32.gmra.mxu0 %v277
        %v365 = vpop.f32.mrf.mxu0
        %v366 = vadd.f32 0.0, %v365
        %367 = vmatmul.f32.gmra.mxu0 %v280
        %v368 = vpop.f32.mrf.mxu0
        %v369 = vadd.f32 0.0, %v368
        %370 = vmatmul.f32.gmra.mxu0 %v283
        %v371 = vpop.f32.mrf.mxu0
        %v372 = vadd.f32 0.0, %v371
        %373 = vmatmul.f32.gmra.mxu0 %v286
        %v374 = vpop.f32.mrf.mxu0
        %v375 = vadd.f32 0.0, %v374
        %376 = vdwg.mxu0
        %v377 = vtanh.pop %v313
        %v378 = vtanh.pop %v354
        %v379 = vtanh.pop %v316
        %v380 = vtanh.pop %v357
        %v381 = vtanh.pop %v319
        %v382 = vtanh.pop %v360
        %v383 = vtanh.pop %v322
        %v384 = vtanh.pop %v363
        %v385 = vtanh.pop %v325
        %v386 = vtanh.pop %v366
        %v387 = vtanh.pop %v328
        %v388 = vtanh.pop %v369
        %v389 = vtanh.pop %v331
        %v390 = vtanh.pop %v372
        %v391 = vtanh.pop %v334
        %v392 = vtanh.pop %v375
        %v393 = vld [vmem:[%s2] sm:$0xff]
        %v394 = vld [vmem:[%s2 + $0x8] sm:$0xff]
        %v395 = vld [vmem:[%s2 + $0x10] sm:$0xff]
        %v396 = vld [vmem:[%s2 + $0x18] sm:$0xff]
        %v397 = vld [vmem:[%s2 + $0x20] sm:$0xff]
        %v398 = vld [vmem:[%s4] sm:$0xff]
        %v399 = vld [vmem:[%s4 + $0x8] sm:$0xff]
        %v400 = vld [vmem:[%s4 + $0x10] sm:$0xff]
        %v401 = vld [vmem:[%s4 + $0x18] sm:$0xff]
        %v402 = vld [vmem:[%s4 + $0x20] sm:$0xff]
        %404 = vset.pattern.permute.xlu0 0
        %405 = vperm.xlu0 %404, %v398
        %v406 = vpop.permute.xlu0 %405
        %409 = vset.pattern.permute.xlu0 0
        %410 = vperm.xlu0 %409, %v399
        %v411 = vpop.permute.xlu0 %410
        %414 = vset.pattern.permute.xlu0 0
        %415 = vperm.xlu0 %414, %v400
        %v416 = vpop.permute.xlu0 %415
        %419 = vset.pattern.permute.xlu0 0
        %420 = vperm.xlu0 %419, %v401
        %v421 = vpop.permute.xlu0 %420
        %424 = vset.pattern.permute.xlu0 0
        %425 = vperm.xlu0 %424, %v402
        %v426 = vpop.permute.xlu0 %425
        %vm428 = vcmask 523264
        %v430 = vsel %vm428, %v393, 0
        %v433 = vsel %vm428, %v394, 0
        %v436 = vsel %vm428, %v395, 0
        %v439 = vsel %vm428, %v396, 0
        %v442 = vsel %vm428, %v397, 0
        %444 = vmatpush.msra.mxu0 0.0
        %445 = vmatpush.msra.mxu0 0.0
        %446 = vmatpush.msra.mxu0 0.0
        %447 = vmatpush.msra.mxu0 0.0
        %448 = vmatpush.msra.mxu0 0.0
        %449 = vmatpush.msra.mxu0 0.0
        %450 = vmatpush.msra.mxu0 0.0
        %451 = vmatpush.msra.mxu0 0.0
        %452 = vmatpush.msra.mxu0 %v391
        %453 = vmatpush.msra.mxu0 %v389
        %454 = vmatpush.msra.mxu0 %v387
        %455 = vmatpush.msra.mxu0 %v385
        %456 = vmatpush.msra.mxu0 %v383
        %457 = vmatpush.msra.mxu0 %v381
        %458 = vmatpush.msra.mxu0 %v379
        %459 = vmatpush.msra.mxu0 %v377
        %460 = vmatmul.f32.gmra.mxu0 %v430
        %v461 = vpop.f32.mrf.mxu0
        %v462 = vadd.f32 %v406, %v461
        %463 = vmatmul.f32.gmra.mxu0 %v433
        %v464 = vpop.f32.mrf.mxu0
        %v465 = vadd.f32 %v411, %v464
        %466 = vmatmul.f32.gmra.mxu0 %v436
        %v467 = vpop.f32.mrf.mxu0
        %v468 = vadd.f32 %v416, %v467
        %469 = vmatmul.f32.gmra.mxu0 %v439
        %v470 = vpop.f32.mrf.mxu0
        %v471 = vadd.f32 %v421, %v470
        %472 = vmatmul.f32.gmra.mxu0 %v442
        %v473 = vpop.f32.mrf.mxu0
        %v474 = vadd.f32 %v426, %v473
        %475 = vdwg.mxu0
        %476 = vmatpush.msra.mxu0 0.0
        %477 = vmatpush.msra.mxu0 0.0
        %478 = vmatpush.msra.mxu0 0.0
        %479 = vmatpush.msra.mxu0 0.0
        %480 = vmatpush.msra.mxu0 0.0
        %481 = vmatpush.msra.mxu0 0.0
        %482 = vmatpush.msra.mxu0 0.0
        %483 = vmatpush.msra.mxu0 0.0
        %484 = vmatpush.msra.mxu0 %v392
        %485 = vmatpush.msra.mxu0 %v390
        %486 = vmatpush.msra.mxu0 %v388
        %487 = vmatpush.msra.mxu0 %v386
        %488 = vmatpush.msra.mxu0 %v384
        %489 = vmatpush.msra.mxu0 %v382
        %490 = vmatpush.msra.mxu0 %v380
        %491 = vmatpush.msra.mxu0 %v378
        %492 = vmatmul.f32.gmra.mxu0 %v430
        %v493 = vpop.f32.mrf.mxu0
        %v494 = vadd.f32 %v406, %v493
        %495 = vmatmul.f32.gmra.mxu0 %v433
        %v496 = vpop.f32.mrf.mxu0
        %v497 = vadd.f32 %v411, %v496
        %498 = vmatmul.f32.gmra.mxu0 %v436
        %v499 = vpop.f32.mrf.mxu0
        %v500 = vadd.f32 %v416, %v499
        %501 = vmatmul.f32.gmra.mxu0 %v439
        %v502 = vpop.f32.mrf.mxu0
        %v503 = vadd.f32 %v421, %v502
        %504 = vmatmul.f32.gmra.mxu0 %v442
        %v505 = vpop.f32.mrf.mxu0
        %v506 = vadd.f32 %v426, %v505
        %507 = vdwg.mxu0
        %v508 = vtanh.pop %v462
        %v509 = vtanh.pop %v494
        %v510 = vtanh.pop %v465
        %v511 = vtanh.pop %v497
        %v512 = vtanh.pop %v468
        %v513 = vtanh.pop %v500
        %v514 = vtanh.pop %v471
        %v515 = vtanh.pop %v503
        %v516 = vperm.slane %v253, 0
        %v517 = vperm.slane %v254, 0
        %v518 = vmul.f32 %v474, %v516
        %v519 = vmul.f32 %v506, %v517
        %v520 = vld [vmem:[%s4 + $0x28] sm:$0xff]
        %v521 = vld [vmem:[%s4 + $0x30] sm:$0xff]
        %v522 = vld [vmem:[%s4 + $0x38] sm:$0xff]
        %v523 = vld [vmem:[%s4 + $0x40] sm:$0xff]
        %v524 = vmul.f32 %v508, %v508
        %v525 = vmul.f32 %v509, %v509
        %v526 = vmul.f32 %v510, %v510
        %v527 = vmul.f32 %v511, %v511
        %v528 = vmul.f32 %v512, %v512
        %v529 = vmul.f32 %v513, %v513
        %v530 = vmul.f32 %v514, %v514
        %v531 = vmul.f32 %v515, %v515
        %v532 = vsub.f32 1.0, %v524
        %v533 = vsub.f32 1.0, %v525
        %v534 = vsub.f32 1.0, %v526
        %v535 = vsub.f32 1.0, %v527
        %v536 = vsub.f32 1.0, %v528
        %v537 = vsub.f32 1.0, %v529
        %v538 = vsub.f32 1.0, %v530
        %v539 = vsub.f32 1.0, %v531
        %541 = vset.pattern.permute.xlu0 0
        %542 = vperm.xlu0 %541, %v520
        %v543 = vpop.permute.xlu0 %542
        %546 = vset.pattern.permute.xlu0 0
        %547 = vperm.xlu0 %546, %v521
        %v548 = vpop.permute.xlu0 %547
        %551 = vset.pattern.permute.xlu0 0
        %552 = vperm.xlu0 %551, %v522
        %v553 = vpop.permute.xlu0 %552
        %556 = vset.pattern.permute.xlu0 0
        %557 = vperm.xlu0 %556, %v523
        %v558 = vpop.permute.xlu0 %557
        %v560 = vmul.f32 %v543, %v532
        %v561 = vmul.f32 %v543, %v533
        %v562 = vmul.f32 %v548, %v534
        %v563 = vmul.f32 %v548, %v535
        %v564 = vmul.f32 %v553, %v536
        %v565 = vmul.f32 %v553, %v537
        %v566 = vmul.f32 %v558, %v538
        %v567 = vmul.f32 %v558, %v539
        %v568 = vld [vmem:[%s3] sm:$0xff]
        %v569 = vld [vmem:[%s3 + $0x8] sm:$0xff]
        %v570 = vld [vmem:[%s3 + $0x10] sm:$0xff]
        %v571 = vld [vmem:[%s3 + $0x18] sm:$0xff]
        %vm572 = vcmask 261120
        %v574 = vsel %vm572, %v568, 0
        %v577 = vsel %vm572, %v569, 0
        %v580 = vsel %vm572, %v570, 0
        %v583 = vsel %vm572, %v571, 0
        %585 = vmatpush.msra.mxu0 0.0
        %586 = vmatpush.msra.mxu0 0.0
        %587 = vmatpush.msra.mxu0 0.0
        %588 = vmatpush.msra.mxu0 0.0
        %589 = vmatpush.msra.mxu0 0.0
        %590 = vmatpush.msra.mxu0 0.0
        %591 = vmatpush.msra.mxu0 0.0
        %592 = vmatpush.msra.mxu0 0.0
        %593 = vmatpush.msra.mxu0 0.0
        %594 = vmatpush.msra.mxu0 0.0
        %595 = vmatpush.msra.mxu0 0.0
        %596 = vmatpush.msra.mxu0 0.0
        %597 = vmatpush.msra.mxu0 %v566
        %598 = vmatpush.msra.mxu0 %v564
        %599 = vmatpush.msra.mxu0 %v562
        %600 = vmatpush.msra.mxu0 %v560
        %601 = vmatmul.f32.gmra.mxu0 %v574
        %v602 = vpop.f32.mrf.mxu0
        %v603 = vadd.f32 0.0, %v602
        %604 = vmatmul.f32.gmra.mxu0 %v577
        %v605 = vpop.f32.mrf.mxu0
        %v606 = vadd.f32 0.0, %v605
        %607 = vmatmul.f32.gmra.mxu0 %v580
        %v608 = vpop.f32.mrf.mxu0
        %v609 = vadd.f32 0.0, %v608
        %610 = vmatmul.f32.gmra.mxu0 %v583
        %v611 = vpop.f32.mrf.mxu0
        %v612 = vadd.f32 0.0, %v611
        %613 = vdwg.mxu0
        %614 = vmatpush.msra.mxu0 0.0
        %615 = vmatpush.msra.mxu0 0.0
        %616 = vmatpush.msra.mxu0 0.0
        %617 = vmatpush.msra.mxu0 0.0
        %618 = vmatpush.msra.mxu0 0.0
        %619 = vmatpush.msra.mxu0 0.0
        %620 = vmatpush.msra.mxu0 0.0
        %621 = vmatpush.msra.mxu0 0.0
        %622 = vmatpush.msra.mxu0 0.0
        %623 = vmatpush.msra.mxu0 0.0
        %624 = vmatpush.msra.mxu0 0.0
        %625 = vmatpush.msra.mxu0 0.0
        %626 = vmatpush.msra.mxu0 %v567
        %627 = vmatpush.msra.mxu0 %v565
        %628 = vmatpush.msra.mxu0 %v563
        %629 = vmatpush.msra.mxu0 %v561
        %630 = vmatmul.f32.gmra.mxu0 %v574
        %v631 = vpop.f32.mrf.mxu0
        %v632 = vadd.f32 0.0, %v631
        %633 = vmatmul.f32.gmra.mxu0 %v577
        %v634 = vpop.f32.mrf.mxu0
        %v635 = vadd.f32 0.0, %v634
        %636 = vmatmul.f32.gmra.mxu0 %v580
        %v637 = vpop.f32.mrf.mxu0
        %v638 = vadd.f32 0.0, %v637
        %639 = vmatmul.f32.gmra.mxu0 %v583
        %v640 = vpop.f32.mrf.mxu0
        %v641 = vadd.f32 0.0, %v640
        %642 = vdwg.mxu0
        %v643 = vmul.f32 %v377, %v377
        %v644 = vmul.f32 %v378, %v378
        %v645 = vmul.f32 %v379, %v379
        %v646 = vmul.f32 %v380, %v380
        %v647 = vmul.f32 %v381, %v381
        %v648 = vmul.f32 %v382, %v382
        %v649 = vmul.f32 %v383, %v383
        %v650 = vmul.f32 %v384, %v384
        %v651 = vsub.f32 1.0, %v643
        %v652 = vsub.f32 1.0, %v644
        %v653 = vsub.f32 1.0, %v645
        %v654 = vsub.f32 1.0, %v646
        %v655 = vsub.f32 1.0, %v647
        %v656 = vsub.f32 1.0, %v648
        %v657 = vsub.f32 1.0, %v649
        %v658 = vsub.f32 1.0, %v650
        %v659 = vmul.f32 %v603, %v651
        %v660 = vmul.f32 %v632, %v652
        %v661 = vmul.f32 %v606, %v653
        %v662 = vmul.f32 %v635, %v654
        %v663 = vmul.f32 %v609, %v655
        %v664 = vmul.f32 %v638, %v656
        %v665 = vmul.f32 %v612, %v657
        %v666 = vmul.f32 %v641, %v658
        %v667 = vld [vmem:[%s3 + $0x20] sm:$0xff]
        %v669 = vsel %vm572, %v667, 0
        %671 = vmatpush.msra.mxu0 0.0
        %672 = vmatpush.msra.mxu0 0.0
        %673 = vmatpush.msra.mxu0 0.0
        %674 = vmatpush.msra.mxu0 0.0
        %675 = vmatpush.msra.mxu0 0.0
        %676 = vmatpush.msra.mxu0 0.0
        %677 = vmatpush.msra.mxu0 0.0
        %678 = vmatpush.msra.mxu0 0.0
        %679 = vmatpush.msra.mxu0 0.0
        %680 = vmatpush.msra.mxu0 0.0
        %681 = vmatpush.msra.mxu0 0.0
        %682 = vmatpush.msra.mxu0 0.0
        %683 = vmatpush.msra.mxu0 %v665
        %684 = vmatpush.msra.mxu0 %v663
        %685 = vmatpush.msra.mxu0 %v661
        %686 = vmatpush.msra.mxu0 %v659
        %687 = vmatmul.f32.gmra.mxu0 %v669
        %v688 = vpop.f32.mrf.mxu0
        %v689 = vadd.f32 %v518, %v688
        %690 = vdwg.mxu0
        %691 = vmatpush.msra.mxu0 0.0
        %692 = vmatpush.msra.mxu0 0.0
        %693 = vmatpush.msra.mxu0 0.0
        %694 = vmatpush.msra.mxu0 0.0
        %695 = vmatpush.msra.mxu0 0.0
        %696 = vmatpush.msra.mxu0 0.0
        %697 = vmatpush.msra.mxu0 0.0
        %698 = vmatpush.msra.mxu0 0.0
        %699 = vmatpush.msra.mxu0 0.0
        %700 = vmatpush.msra.mxu0 0.0
        %701 = vmatpush.msra.mxu0 0.0
        %702 = vmatpush.msra.mxu0 0.0
        %703 = vmatpush.msra.mxu0 %v666
        %704 = vmatpush.msra.mxu0 %v664
        %705 = vmatpush.msra.mxu0 %v662
        %706 = vmatpush.msra.mxu0 %v660
        %707 = vmatmul.f32.gmra.mxu0 %v669
        %v708 = vpop.f32.mrf.mxu0
        %v709 = vadd.f32 %v519, %v708
        %710 = vdwg.mxu0
        %711 = vst [vmem:[%s248] sm:$0xff] %v689
        %712 = vst [vmem:[%s248 + $0x8] sm:$0xff] %v709
        %s713 = sand.u32 %s137, 1
        %s714 = scalar_lea.sflag [#allocation4], %s713
        %s715 = sand.u32 %s137, 1
        %s716 = smul.addr %s715, 16
        %s717 = scalar_lea.vmem [#allocation3], %s716
        // Predicated region
        $region64: #{symoden_r_forward.1} parent=58 // pred_check
          %p718 = pneg %p147
        $region65: #{symoden_r_forward.1} parent=58 // pred_check_branch
          %720 = sbr.rel (%p718) target = $region67
        $region66: #{symoden_r_forward.1} parent=58 // pred_region
          %s721 = smul.u32 2, %s19
          %723 = vsyncadd %s714, 0
          %s724 = smul.addr %s721, 8
          %s725 = scalar_lea.hbm %s5, %s724
          %s727 = sshll.u32 %s717, 4
          %s728 = int_to_ptr.vmem [resolvable:$true] %s727
          %s729 = sshll.u32 %s725, 4
          %s730 = int_to_ptr.hbm [resolvable:$true] %s729
          %732 = dma.vmem_to_hbm [thread:$0]  %s728, 256, %s730, %s714
        $region67: #{symoden_r_forward.1} parent=58 // pred_fallthru
          _
      $region59: #{symoden_r_forward.1} parent=5 // pred_fallthru
        _
      %p733 = scmp.le.s32.totalorder 2, %s14
      // Predicated region
      $region68: #{symoden_r_forward.1} parent=5 // pred_check
        %p734 = pneg %p733
      $region69: #{symoden_r_forward.1} parent=5 // pred_check_branch
        %736 = sbr.rel (%p734) target = $region71
      $region70: #{symoden_r_forward.1} parent=5 // pred_region
        %s737 = ssub.s32 %s14, 2
        // Predicated region
        $region72: #{symoden_r_forward.1} parent=70 // pred_check
          %p738 = pneg %p153
        $region73: #{symoden_r_forward.1} parent=70 // pred_check_branch
          %740 = sbr.rel (%p738) target = $region75
        $region74: #{symoden_r_forward.1} parent=70 // pred_region
          %s741 = sand.u32 %s138, 1
          %s742 = scalar_lea.sflag [#allocation4], %s741
          %s743 = sand.u32 %s138, 1
          %s744 = smul.addr %s743, 16
          %s745 = scalar_lea.vmem [#allocation3], %s744
          %747 = dma.done %s742, 256
        $region75: #{symoden_r_forward.1} parent=70 // pred_fallthru
          _
      $region71: #{symoden_r_forward.1} parent=5 // pred_fallthru
        _
    $region6: #{symoden_r_forward.1} parent=1 // loop_footer
      %s18 = sadd.s32 1, %s14
    $region7: #{symoden_r_forward.1} parent=1 // loop_footer_branch
      %13 = sbr.rel target = $region3
    $region8: #{symoden_r_forward.1} parent=1 // loop_exit
      _
    %748 = vsyncpa [#allocation4], 1
    %s749 = scalar_lea.sflag [#allocation4], 1
    %750 = vsyncpa %s749, 1

</llo_original>
